<compile_context>
chip_gen: v7x
topology: tpu7x:2x2x1
jax: 0.10.0
libtpu: 0.0.40
codegen_flags: <defaults>
</compile_context>

<pallas_src>
import math
from functools import partial

import jax
import jax.numpy as jnp
import numpy as np
from jax.experimental import pallas as pl
from jax.experimental.pallas import tpu as pltpu


# ----------------------------- parameter setup (plain JAX glue) -----------------------------

def ether_H(R):
    """H[b] = I - 2 * R[b]^T R[b] / (R[b] R[b]^T)   for each diagonal block b.

    Note: denom = sum(R[b]^2) can be zero -> divide-by-zero, matching the torch module.
    """
    nb, r = R.shape
    I = jnp.eye(r, dtype=R.dtype)
    outer = R[:, :, None] * R[:, None, :]              # (nb, r, r)
    denom = jnp.sum(R * R, axis=-1)[:, None, None]     # (nb, 1, 1)
    return I[None, :, :] - 2.0 * outer / denom          # (nb, r, r)


def transform_weight(W1, H):
    """Exactly mirrors the torch reshape/einsum/reshape (row-major, same as torch)."""
    F, D = W1.shape
    nb = H.shape[0]
    filt = W1.reshape(nb, F, D // nb)
    filt = jnp.einsum("rfm,rmn->rfn", filt, H)
    return filt.reshape(F, D)


def precompute_ether_small_weights(ether_R, W1, W2, *, compute_dtype=jnp.float32,
                                   mode="auto"):
    """Hoisted parameter setup: run once when ether_R/W1/W2 are static across calls."""
    F, D = W1.shape
    O = W2.shape[0]
    H = ether_H(ether_R)                    # (nb, r, r)
    filt = transform_weight(W1, H)          # (F, D)  effective ETHER-rotated weight
    if mode == "auto":
        # Fold only while the (D, O) combined weight stays comfortably VMEM-resident;
        # the chained path keeps only F*(D+O) weight bytes and an on-chip (tm, F) mid.
        folded_bytes = D * O * jnp.dtype(compute_dtype).itemsize
        mode = "folded" if folded_bytes <= (4 << 20) else "chained"
    if mode == "folded":
        # out = (x @ filt.T) @ W2.T == x @ (W2 @ filt).T
        w_comb = (W2 @ filt).T              # (D, O)
        return {"mode": "folded", "compute_dtype": compute_dtype,
                "w_comb": w_comb.astype(compute_dtype)}
    if mode == "chained":
        return {"mode": "chained", "compute_dtype": compute_dtype,
                "filt_t": filt.T.astype(compute_dtype),   # (D, F)
                "w2_t": W2.T.astype(compute_dtype)}       # (F, O)
    raise ValueError(f"unknown mode: {mode}")


# --------------------------------------- helpers --------------------------------------------

def _round_up(x, m):
    return ((x + m - 1) // m) * m


def _vmem_capacity_bytes():
    """Generation-aware VMEM capacity (64 MiB on v7x, 128 MiB on v5e/v6e)."""
    try:
        cap = getattr(pltpu.get_tpu_info(), "vmem_capacity_bytes", None)
        if cap:
            return int(cap)
    except Exception:
        pass
    return 64 * 1024 * 1024  # conservative (v7x-sized) fallback


def _choose_tm(M, D, O, x_itemsize, out_itemsize, weight_bytes, budget, target=8192):
    """Row tile: whole M for small inputs, ~8192 rows otherwise, clamped so the actual
    Pallas allocation (2x x tile + 2x out tile + single-buffered weights) fits budget."""
    tm = min(target, _round_up(M, 8))

    def step_bytes(t):
        return 2 * t * D * x_itemsize + 2 * t * O * out_itemsize + weight_bytes

    while tm > 8 and step_bytes(tm) > budget:
        tm = max(8, _round_up(tm // 2, 8))
    return tm


# ----------------------------------- Pallas kernels (hot path) ------------------------------

def _folded_kernel(x_ref, w_ref, o_ref, *, compute_dtype):
    # out[tm, O] = x[tm, D] @ W_comb[D, O]; operand cast happens in-kernel (VPU, free
    # under the slack of a mem-bound kernel), accumulation in f32 on the MXU.
    x = x_ref[...].astype(compute_dtype)
    acc = jnp.dot(x, w_ref[...], preferred_element_type=jnp.float32)
    o_ref[...] = acc.astype(o_ref.dtype)


def _chained_kernel(x_ref, filt_t_ref, w2_t_ref, o_ref, *, compute_dtype):
    # mid[tm, F] = x @ filt.T stays on-chip (never written to HBM); out = mid @ W2.T.
    x = x_ref[...].astype(compute_dtype)
    mid = jnp.dot(x, filt_t_ref[...], preferred_element_type=jnp.float32)
    acc = jnp.dot(mid.astype(compute_dtype), w2_t_ref[...],
                  preferred_element_type=jnp.float32)
    o_ref[...] = acc.astype(o_ref.dtype)


def _make_pallas_call(kernel, out_shape, grid, x_spec, weight_shapes, out_spec,
                      compiler_params, single_buffer_weights):
    w_specs = []
    for shp in weight_shapes:
        if single_buffer_weights:
            # Constant index_map -> the block never changes; one buffer is enough.
            w_specs.append(pl.BlockSpec(shp, lambda i: (0, 0),
                                        pipeline_mode=pl.Buffered(1)))
        else:
            w_specs.append(pl.BlockSpec(shp, lambda i: (0, 0)))
    return pl.pallas_call(
        kernel,
        out_shape=out_shape,
        grid=grid,
        in_specs=[x_spec] + w_specs,
        out_specs=out_spec,
        compiler_params=compiler_params,
    )


def ether_linear_small_apply(x, params, *, out_dtype=jnp.float32, row_block=None):
    """x: (..., D_in). Returns (..., out_features) in out_dtype.

    Invariant (documented per review): the last row block may be ragged; out-of-range
    input rows read garbage, but matmul rows are independent and Pallas never writes
    the out-of-range output rows back, so valid rows are exact.
    """
    mode = params["mode"]
    compute_dtype = params["compute_dtype"]
    D = x.shape[-1]
    x2d = x.reshape(-1, D)                  # metadata-only for contiguous x
    M = x2d.shape[0]

    # Honest, generation-aware VMEM accounting.
    cap = _vmem_capacity_bytes()
    vmem_limit = int(max(32 << 20, (cap * 3) // 4))       # 48 MiB on v7x, 96 MiB on v5e/v6e
    tile_budget = int(max(8 << 20, vmem_limit - (4 << 20)))

    w_itemsize = jnp.dtype(compute_dtype).itemsize
    x_itemsize = jnp.dtype(x2d.dtype).itemsize
    out_itemsize = jnp.dtype(out_dtype).itemsize

    if mode == "folded":
        w_comb = params["w_comb"]                          # (D, O)
        O = w_comb.shape[1]
        weight_shapes = [(D, O)]
        operands_w = (w_comb,)
        kernel = partial(_folded_kernel, compute_dtype=compute_dtype)
        weight_bytes = D * O * w_itemsize
    else:
        filt_t = params["filt_t"]                          # (D, F)
        w2_t = params["w2_t"]                              # (F, O)
        F = filt_t.shape[1]
        O = w2_t.shape[1]
        weight_shapes = [(D, F), (F, O)]
        operands_w = (filt_t, w2_t)
        kernel = partial(_chained_kernel, compute_dtype=compute_dtype)
        weight_bytes = (D * F + F * O) * w_itemsize

    tm = row_block if row_block is not None else _choose_tm(
        M, D, O, x_itemsize, out_itemsize, weight_bytes, tile_budget)
    grid_m = pl.cdiv(M, tm)                 # >= 2 once M exceeds one tile -> feeds both v7x TCs

    compiler_params = pltpu.CompilerParams(
        dimension_semantics=("parallel",),
        vmem_limit_bytes=vmem_limit,
    )

    x_spec = pl.BlockSpec((tm, D), lambda i: (i, 0))
    out_spec = pl.BlockSpec((tm, O), lambda i: (i, 0))     # last dim == full O: dense stores,
                                                           # no lane padding, no post-slice
    out_shape = jax.ShapeDtypeStruct((M, O), out_dtype)

    try:
        out = _make_pallas_call(kernel, out_shape, (grid_m,), x_spec, weight_shapes,
                                out_spec, compiler_params,
                                single_buffer_weights=True)(x2d, *operands_w)
    except Exception:
        # Fallback for jax versions without pl.Buffered / pipeline_mode support:
        # identical semantics, default double-buffered weight specs.
        out = _make_pallas_call(kernel, out_shape, (grid_m,), x_spec, weight_shapes,
                                out_spec, compiler_params,
                                single_buffer_weights=False)(x2d, *operands_w)

    return out.reshape(*x.shape[:-1], O)


def ether_linear_small_forward(x, ether_R, W1, W2, *, compute_dtype=jnp.float32,
                               out_dtype=jnp.float32, mode="auto"):
    """Convenience wrapper: precompute + apply (use precompute once if params are static)."""
    params = precompute_ether_small_weights(ether_R, W1, W2,
                                            compute_dtype=compute_dtype, mode=mode)
    return ether_linear_small_apply(x, params, out_dtype=out_dtype)


# --------------------------------------- reference ------------------------------------------

def reference_forward(x, ether_R, W1, W2):
    H = ether_H(ether_R)
    filt = transform_weight(W1, H)
    mid = x @ filt.T
    return mid @ W2.T


# ----------------------------------------- main ---------------------------------------------

if __name__ == "__main__":
    # Module config (small, consistent with ETHERLinearSmall):
    #   in_features=32, out_features=64, reduction=4 -> mid features F = 16
    #   nb=2, Htype='ether', bias=False, flip_side=False, dropout=0.0
    in_features = 32
    out_features = 64
    reduction = 4
    nb = 2
    F_mid = out_features // reduction            # 16
    r = in_features // nb                        # 16

    batch, seq = 2, 8
    key = jax.random.PRNGKey(0)
    kx, kr, k1, k2, kx2 = jax.random.split(key, 5)

    # Deterministic synthetic parameters (shapes match the torch module's __init__):
    #   ether_R: (nb, r) kaiming-uniform-ish ; W1: (F_mid, in) ; W2: (out, F_mid)
    bound_r = math.sqrt(6.0 / (6.0 * r))
    ether_R = jax.random.uniform(kr, (nb, r), jnp.float32, -bound_r, bound_r)
    b1 = 1.0 / math.sqrt(in_features)
    W1 = jax.random.uniform(k1, (F_mid, in_features), jnp.float32, -b1, b1)
    b2 = 1.0 / math.sqrt(F_mid)
    W2 = jax.random.uniform(k2, (out_features, F_mid), jnp.float32, -b2, b2)
    # TODO(synk): ether_dropout > 0 (train-mode dropout) not modeled; eval-mode is identity.

    x = jax.random.normal(kx, (batch, seq, in_features), jnp.float32)
    ref = reference_forward(x.reshape(-1, in_features), ether_R, W1, W2).reshape(
        batch, seq, out_features
    )

    # 1) folded f32 path (params precomputed once, hot path = single pallas_call).
    params_folded = precompute_ether_small_weights(
        ether_R, W1, W2, compute_dtype=jnp.float32, mode="folded")
    out_folded = jax.block_until_ready(ether_linear_small_apply(x, params_folded))
    np.testing.assert_allclose(np.asarray(out_folded), np.asarray(ref),
                               rtol=1e-5, atol=1e-5)

    # 2) chained f32 path (the large-D/O-safe variant with on-chip intermediate).
    params_chained = precompute_ether_small_weights(
        ether_R, W1, W2, compute_dtype=jnp.float32, mode="chained")
    out_chained = jax.block_until_ready(ether_linear_small_apply(x, params_chained))
    np.testing.assert_allclose(np.asarray(out_chained), np.asarray(ref),
                               rtol=1e-5, atol=1e-5)

    # 3) ragged last row block (no wrapper padding; grid handles the partial tile).
    x_odd = jax.random.normal(kx2, (1, 13, in_features), jnp.float32)
    ref_odd = reference_forward(x_odd.reshape(-1, in_features), ether_R, W1, W2).reshape(
        1, 13, out_features)
    out_odd = jax.block_until_ready(
        ether_linear_small_apply(x_odd, params_folded, row_block=8))
    np.testing.assert_allclose(np.asarray(out_odd), np.asarray(ref_odd),
                               rtol=1e-5, atol=1e-5)

    # 4) bf16 operand + bf16 output path (f32 accumulation): halves writeback bytes.
    params_bf16 = precompute_ether_small_weights(
        ether_R, W1, W2, compute_dtype=jnp.bfloat16, mode="auto")
    out_bf16 = jax.block_until_ready(
        ether_linear_small_apply(x, params_bf16, out_dtype=jnp.bfloat16))
    np.testing.assert_allclose(np.asarray(out_bf16).astype(np.float32),
                               np.asarray(ref), rtol=2e-2, atol=2e-2)

    print("KERNEL_OK")
</pallas_src>

<mosaic_0001>
module attributes {stable_mosaic.version = 11 : i64} {
  func.func @_folded_kernel(%arg0: i32, %arg1: memref<16x32xf32, #tpu.memory_space<vmem>>, %arg2: memref<32x64xf32, #tpu.memory_space<vmem>>, %arg3: memref<16x64xf32, #tpu.memory_space<vmem>>) attributes {dimension_semantics = [#tpu.dimension_semantics<parallel>], iteration_bounds = array<i64: 1>, scalar_prefetch = 0 : i64, scratch_operands = 0 : i64, tpu.core_type = #tpu.core_type<tc>, window_params = [{transform_indices = @transform_0, window_bounds = array<i64: 16, 32>}, {pipeline_mode = #tpu.pipeline_mode<synchronous>, transform_indices = @transform_1, window_bounds = array<i64: 32, 64>}, {transform_indices = @transform_2, window_bounds = array<i64: 16, 64>}]} {
    %c0 = arith.constant 0 : index
    %c0_0 = arith.constant 0 : index
    %0 = vector.load %arg1[%c0, %c0_0] : memref<16x32xf32, #tpu.memory_space<vmem>>, vector<16x32xf32>
    %c0_1 = arith.constant 0 : index
    %c0_2 = arith.constant 0 : index
    %1 = vector.load %arg2[%c0_1, %c0_2] : memref<32x64xf32, #tpu.memory_space<vmem>>, vector<32x64xf32>
    %cst = arith.constant dense<0.000000e+00> : vector<16x64xf32>
    %2 = tpu.matmul %0, %1, %cst {dimension_numbers = #tpu.dot_dimension_numbers<[1], [0], [0], [1], [0, 0, 1, 1], [], []>} : vector<16x32xf32>, vector<32x64xf32>, vector<16x64xf32> -> vector<16x64xf32>
    %c0_3 = arith.constant 0 : index
    %c0_4 = arith.constant 0 : index
    %3 = vector.load %arg3[%c0_3, %c0_4] : memref<16x64xf32, #tpu.memory_space<vmem>>, vector<16x64xf32>
    tpu.vector_store %arg3[%c0_3, %c0_4], %2 {strides = array<i32>} : memref<16x64xf32, #tpu.memory_space<vmem>>, vector<16x64xf32>,
    return
  }
  func.func @transform_0(%arg0: i32) -> (i32, i32) {
    %c0_i32 = arith.constant 0 : i32
    %c0_i32_0 = arith.constant 0 : i32
    return %arg0, %c0_i32 : i32, i32
  }
  func.func @transform_1(%arg0: i32) -> (i32, i32) {
    %c0_i32 = arith.constant 0 : i32
    %c0_i32_0 = arith.constant 0 : i32
    %c0_i32_1 = arith.constant 0 : i32
    return %c0_i32, %c0_i32_0 : i32, i32
  }
  func.func @transform_2(%arg0: i32) -> (i32, i32) {
    %c0_i32 = arith.constant 0 : i32
    %c0_i32_0 = arith.constant 0 : i32
    return %arg0, %c0_i32 : i32, i32
  }
}

module attributes {stable_mosaic.version = 11 : i64} {
  func.func @_folded_kernel(%arg0: i32, %arg1: memref<16x32xf32, #tpu.memory_space<vmem>>, %arg2: memref<32x64xf32, #tpu.memory_space<vmem>>, %arg3: memref<16x64xf32, #tpu.memory_space<vmem>>) attributes {dimension_semantics = [#tpu.dimension_semantics<parallel>], iteration_bounds = array<i64: 1>, scalar_prefetch = 0 : i64, scratch_operands = 0 : i64, tpu.core_type = #tpu.core_type<tc>, window_params = [{transform_indices = @transform_0, window_bounds = array<i64: 16, 32>}, {pipeline_mode = #tpu.pipeline_mode<synchronous>, transform_indices = @transform_1, window_bounds = array<i64: 32, 64>}, {transform_indices = @transform_2, window_bounds = array<i64: 16, 64>}]} {
    %c0 = arith.constant 0 : index
    %c0_0 = arith.constant 0 : index
    %0 = vector.load %arg1[%c0, %c0_0] : memref<16x32xf32, #tpu.memory_space<vmem>>, vector<16x32xf32>
    %c0_1 = arith.constant 0 : index
    %c0_2 = arith.constant 0 : index
    %1 = vector.load %arg2[%c0_1, %c0_2] : memref<32x64xf32, #tpu.memory_space<vmem>>, vector<32x64xf32>
    %cst = arith.constant dense<0.000000e+00> : vector<16x64xf32>
    %2 = tpu.matmul %0, %1, %cst {dimension_numbers = #tpu.dot_dimension_numbers<[1], [0], [0], [1], [0, 0, 1, 1], [], []>} : vector<16x32xf32>, vector<32x64xf32>, vector<16x64xf32> -> vector<16x64xf32>
    %c0_3 = arith.constant 0 : index
    %c0_4 = arith.constant 0 : index
    %3 = vector.load %arg3[%c0_3, %c0_4] : memref<16x64xf32, #tpu.memory_space<vmem>>, vector<16x64xf32>
    tpu.vector_store %arg3[%c0_3, %c0_4], %2 {strides = array<i32>} : memref<16x64xf32, #tpu.memory_space<vmem>>, vector<16x64xf32>,
    return
  }
  func.func @transform_0(%arg0: i32) -> (i32, i32) {
    %c0_i32 = arith.constant 0 : i32
    %c0_i32_0 = arith.constant 0 : i32
    return %arg0, %c0_i32 : i32, i32
  }
  func.func @transform_1(%arg0: i32) -> (i32, i32) {
    %c0_i32 = arith.constant 0 : i32
    %c0_i32_0 = arith.constant 0 : i32
    %c0_i32_1 = arith.constant 0 : i32
    return %c0_i32, %c0_i32_0 : i32, i32
  }
  func.func @transform_2(%arg0: i32) -> (i32, i32) {
    %c0_i32 = arith.constant 0 : i32
    %c0_i32_0 = arith.constant 0 : i32
    return %arg0, %c0_i32 : i32, i32
  }
}

</mosaic_0001>

<llo_original>
// kernel: tpu_custom_call.1
$region0: #{tpu_custom_call.1}
  #allocation0 [shape = 'u32[]', space=smem, size = 0x4, offset = 0x4, fixed_abs, tag = 'smem constant byte address 0x4 - core index']
  #allocation1 [shape = 'u32[144,128]{1,0:T(1,128)}', space=vmem, size = 0x12000, scoped, tag = 'internal scratch']
  %s0 = inlined_call_operand.hbm [shape: f32[16,32], index: 0, kind: input, shape index: {}]
  %s1 = inlined_call_operand.hbm [shape: f32[32,64], index: 1, kind: input, shape index: {}]
  %s2 = inlined_call_operand.hbm [shape: f32[16,64], index: 2, kind: output, shape index: {}]
  %s3 = sld [smem:[#allocation0]]
  $region26: #{tpu_custom_call.1} parent=0
    _
  %s5 = ssub.s32 1, %s3
  %s6 = scalar_select 0, %s5, %s3
  $region1: #{tpu_custom_call.1} parent=0
    #allocation2 [shape = 'u8[8192]{0}', space=vmem, size = 0x2000, scoped, tag = 'input window, operand 0, single buffered']
    #allocation3 [shape = 's32[1]{0}', space=sflag, size = 0x4, scoped, tag = 'scoped memory for tpu_custom_call.1']
    #allocation4 [shape = 's32[1]{0}', space=sflag, size = 0x4, scoped, tag = 'scoped memory for tpu_custom_call.1']
    #allocation5 [shape = 'u8[16384]{0}', space=vmem, size = 0x4000, scoped, tag = 'input window, operand 1, single buffered']
    #allocation6 [shape = 's32[1]{0}', space=sflag, size = 0x4, scoped, tag = 'scoped memory for tpu_custom_call.1']
    #allocation7 [shape = 'u8[8192]{0}', space=vmem, size = 0x2000, scoped, tag = 'output window, operand 0, single buffered']
    %7 = vsyncpa [#allocation3], 0
    %8 = vsyncpa [#allocation6], 0
    %9 = vsyncpa [#allocation4], 0
    // Predicated region
    $region2: #{tpu_custom_call.1} parent=1 // pred_check
      _
    $region3: #{tpu_custom_call.1} parent=1 // pred_check_branch
      %11 = sbr.rel (0) target = $region5
    $region4: #{tpu_custom_call.1} parent=1 // pred_region
      %s13 = ssub.s32 256, 256
      %14 = vsyncadd [#allocation3], %s13
      %s15 = sshll.u32 [#allocation2], 4
      %s16 = int_to_ptr.vmem [resolvable:$true] %s15
      %21 = dma.hbm_to_vmem [thread:$0]  %s0, 256, %s16, [#allocation3], 128, 128, 8
    $region5: #{tpu_custom_call.1} parent=1 // pred_fallthru
      _
    // Predicated region
    $region6: #{tpu_custom_call.1} parent=1 // pred_check
      _
    $region7: #{tpu_custom_call.1} parent=1 // pred_check_branch
      %23 = sbr.rel (0) target = $region9
    $region8: #{tpu_custom_call.1} parent=1 // pred_region
      %s25 = ssub.s32 512, 512
      %26 = vsyncadd [#allocation6], %s25
      %s27 = sshll.u32 [#allocation5], 4
      %s28 = int_to_ptr.vmem [resolvable:$true] %s27
      %33 = dma.hbm_to_vmem [thread:$0]  %s1, 512, %s28, [#allocation6], 128, 128, 8
    $region9: #{tpu_custom_call.1} parent=1 // pred_fallthru
      _
    // Predicated region
    $region10: #{tpu_custom_call.1} parent=1 // pred_check
      _
    $region11: #{tpu_custom_call.1} parent=1 // pred_check_branch
      %35 = sbr.rel (0) target = $region13
    $region12: #{tpu_custom_call.1} parent=1 // pred_region
      %36 = dma.done [#allocation3], 256
    $region13: #{tpu_custom_call.1} parent=1 // pred_fallthru
      _
    // Predicated region
    $region14: #{tpu_custom_call.1} parent=1 // pred_check
      _
    $region15: #{tpu_custom_call.1} parent=1 // pred_check_branch
      %38 = sbr.rel (0) target = $region17
    $region16: #{tpu_custom_call.1} parent=1 // pred_region
      %39 = dma.done [#allocation6], 512
    $region17: #{tpu_custom_call.1} parent=1 // pred_fallthru
      _
    %v40 = vld [vmem:[#allocation2] sm:$0xff]
    %v41 = vld [vmem:[#allocation2 + $0x8] sm:$0xff]
    %v42 = vld [vmem:[#allocation5] sm:$0xff]
    %v43 = vld [vmem:[#allocation5 + $0x8] sm:$0xff]
    %v44 = vld [vmem:[#allocation5 + $0x10] sm:$0xff]
    %v45 = vld [vmem:[#allocation5 + $0x18] sm:$0xff]
    %vm46 = vcmask 261120
    %v48 = vsel %vm46, %v40, 0
    %v51 = vsel %vm46, %v41, 0
    %53 = vmatprep.subr.mxu0 0.0
    %54 = vmatpush1.msra.mxu0 %v42
    %55 = vmatprep.subr.mxu0 0.0
    %56 = vmatpush1.msra.mxu0 %v43
    %57 = vmatprep.subr.mxu0 0.0
    %58 = vmatpush1.msra.mxu0 %v44
    %59 = vmatprep.subr.mxu0 0.0
    %60 = vmatpush1.msra.mxu0 %v45
    %61 = vmatprep.subr.mxu0 0.0
    %62 = vmatpush1.msra.mxu0 0.0
    %63 = vmatprep.subr.mxu0 0.0
    %64 = vmatpush1.msra.mxu0 0.0
    %65 = vmatprep.subr.mxu0 0.0
    %66 = vmatpush1.msra.mxu0 0.0
    %67 = vmatprep.subr.mxu0 0.0
    %68 = vmatpush1.msra.mxu0 0.0
    %69 = vmatprep.subr.mxu0 0.0
    %70 = vmatpush1.msra.mxu0 0.0
    %71 = vmatprep.subr.mxu0 0.0
    %72 = vmatpush1.msra.mxu0 0.0
    %73 = vmatprep.subr.mxu0 0.0
    %74 = vmatpush1.msra.mxu0 0.0
    %75 = vmatprep.subr.mxu0 0.0
    %76 = vmatpush1.msra.mxu0 0.0
    %77 = vmatprep.subr.mxu0 0.0
    %78 = vmatpush1.msra.mxu0 0.0
    %79 = vmatprep.subr.mxu0 0.0
    %80 = vmatpush1.msra.mxu0 0.0
    %81 = vmatprep.subr.mxu0 0.0
    %82 = vmatpush1.msra.mxu0 0.0
    %83 = vmatprep.subr.mxu0 0.0
    %84 = vmatpush1.msra.mxu0 0.0
    %85 = vmatprep.subr.mxu0 0.0
    %86 = vmatpush1.msra.mxu0 0.0
    %87 = vmatprep.subr.mxu0 0.0
    %88 = vmatpush1.msra.mxu0 0.0
    %89 = vmatprep.subr.mxu0 0.0
    %90 = vmatpush1.msra.mxu0 0.0
    %91 = vmatprep.subr.mxu0 0.0
    %92 = vmatpush1.msra.mxu0 0.0
    %93 = vmatprep.subr.mxu0 0.0
    %94 = vmatpush1.msra.mxu0 0.0
    %95 = vmatprep.subr.mxu0 0.0
    %96 = vmatpush1.msra.mxu0 0.0
    %97 = vmatprep.subr.mxu0 0.0
    %98 = vmatpush1.msra.mxu0 0.0
    %99 = vmatprep.subr.mxu0 0.0
    %100 = vmatpush1.msra.mxu0 0.0
    %101 = vmatprep.subr.mxu0 0.0
    %102 = vmatpush1.msra.mxu0 0.0
    %103 = vmatprep.subr.mxu0 0.0
    %104 = vmatpush1.msra.mxu0 0.0
    %105 = vmatprep.subr.mxu0 0.0
    %106 = vmatpush1.msra.mxu0 0.0
    %107 = vmatprep.subr.mxu0 0.0
    %108 = vmatpush1.msra.mxu0 0.0
    %109 = vmatprep.subr.mxu0 0.0
    %110 = vmatpush1.msra.mxu0 0.0
    %111 = vmatprep.subr.mxu0 0.0
    %112 = vmatpush1.msra.mxu0 0.0
    %113 = vmatprep.subr.mxu0 0.0
    %114 = vmatpush1.msra.mxu0 0.0
    %115 = vmatprep.subr.mxu0 0.0
    %116 = vmatpush1.msra.mxu0 0.0
    %117 = vmatprep.mubr.f32.mxu0 0.0
    %118 = vmatmul.mubr.f32.gmra.mrb[0].mxu0 %v48
    %v119 = vpop.f32.mrb[0].mxu0
    %v120 = vadd.f32 0.0, %v119
    %v121 = vpop.f32.mrb[0].mxu0
    %122 = vmatprep.mubr.f32.mxu0 0.0
    %123 = vmatmul.mubr.f32.gmra.mrb[0].mxu0 %v51
    %v124 = vpop.f32.mrb[0].mxu0
    %v125 = vadd.f32 0.0, %v124
    %v126 = vpop.f32.mrb[0].mxu0
    %127 = vdwg.mxu0
    %vm128 = vcmask 523264
    %129 = vst.msk [vmem:[#allocation7] sm:$0xff] %vm128, %v120
    %130 = vst.msk [vmem:[#allocation7 + $0x8] sm:$0xff] %vm128, %v125
    // Predicated region
    $region18: #{tpu_custom_call.1} parent=1 // pred_check
      _
    $region19: #{tpu_custom_call.1} parent=1 // pred_check_branch
      %132 = sbr.rel (0) target = $region21
    $region20: #{tpu_custom_call.1} parent=1 // pred_region
      %s134 = ssub.s32 256, 256
      %135 = vsyncadd [#allocation4], %s134
      %s136 = sshll.u32 [#allocation7], 4
      %s137 = int_to_ptr.vmem [resolvable:$true] %s136
      %142 = dma.vmem_to_hbm [thread:$0]  %s137, 256, %s2, [#allocation4], 128, 128, 8
    $region21: #{tpu_custom_call.1} parent=1 // pred_fallthru
      _
    // Predicated region
    $region22: #{tpu_custom_call.1} parent=1 // pred_check
      _
    $region23: #{tpu_custom_call.1} parent=1 // pred_check_branch
      %144 = sbr.rel (0) target = $region25
    $region24: #{tpu_custom_call.1} parent=1 // pred_region
      %145 = dma.done [#allocation4], 256
    $region25: #{tpu_custom_call.1} parent=1 // pred_fallthru
      _
    %146 = vsyncpa [#allocation3], 1
    %147 = vsyncpa [#allocation6], 1
    %148 = vsyncpa [#allocation4], 1

// kernel: tpu_custom_call.1
$region0: #{tpu_custom_call.1}
  #allocation0 [shape = 'u32[]', space=smem, size = 0x4, offset = 0x4, fixed_abs, tag = 'smem constant byte address 0x4 - core index']
  #allocation1 [shape = 'u32[144,128]{1,0:T(1,128)}', space=vmem, size = 0x12000, scoped, tag = 'internal scratch']
  %s0 = inlined_call_operand.hbm [shape: f32[16,32], index: 0, kind: input, shape index: {}]
  %s1 = inlined_call_operand.hbm [shape: f32[32,64], index: 1, kind: input, shape index: {}]
  %s2 = inlined_call_operand.hbm [shape: f32[16,64], index: 2, kind: output, shape index: {}]
  %s3 = sld [smem:[#allocation0]]
  $region26: #{tpu_custom_call.1} parent=0
    _
  %s5 = ssub.s32 1, %s3
  %s6 = scalar_select 0, %s5, %s3
  $region1: #{tpu_custom_call.1} parent=0
    #allocation2 [shape = 'u8[8192]{0}', space=vmem, size = 0x2000, scoped, tag = 'input window, operand 0, single buffered']
    #allocation3 [shape = 's32[1]{0}', space=sflag, size = 0x4, scoped, tag = 'scoped memory for tpu_custom_call.1']
    #allocation4 [shape = 's32[1]{0}', space=sflag, size = 0x4, scoped, tag = 'scoped memory for tpu_custom_call.1']
    #allocation5 [shape = 'u8[16384]{0}', space=vmem, size = 0x4000, scoped, tag = 'input window, operand 1, single buffered']
    #allocation6 [shape = 's32[1]{0}', space=sflag, size = 0x4, scoped, tag = 'scoped memory for tpu_custom_call.1']
    #allocation7 [shape = 'u8[8192]{0}', space=vmem, size = 0x2000, scoped, tag = 'output window, operand 0, single buffered']
    %7 = vsyncpa [#allocation3], 0
    %8 = vsyncpa [#allocation6], 0
    %9 = vsyncpa [#allocation4], 0
    // Predicated region
    $region2: #{tpu_custom_call.1} parent=1 // pred_check
      _
    $region3: #{tpu_custom_call.1} parent=1 // pred_check_branch
      %11 = sbr.rel (0) target = $region5
    $region4: #{tpu_custom_call.1} parent=1 // pred_region
      %s13 = ssub.s32 256, 256
      %14 = vsyncadd [#allocation3], %s13
      %s15 = sshll.u32 [#allocation2], 4
      %s16 = int_to_ptr.vmem [resolvable:$true] %s15
      %21 = dma.hbm_to_vmem [thread:$0]  %s0, 256, %s16, [#allocation3], 128, 128, 8
    $region5: #{tpu_custom_call.1} parent=1 // pred_fallthru
      _
    // Predicated region
    $region6: #{tpu_custom_call.1} parent=1 // pred_check
      _
    $region7: #{tpu_custom_call.1} parent=1 // pred_check_branch
      %23 = sbr.rel (0) target = $region9
    $region8: #{tpu_custom_call.1} parent=1 // pred_region
      %s25 = ssub.s32 512, 512
      %26 = vsyncadd [#allocation6], %s25
      %s27 = sshll.u32 [#allocation5], 4
      %s28 = int_to_ptr.vmem [resolvable:$true] %s27
      %33 = dma.hbm_to_vmem [thread:$0]  %s1, 512, %s28, [#allocation6], 128, 128, 8
    $region9: #{tpu_custom_call.1} parent=1 // pred_fallthru
      _
    // Predicated region
    $region10: #{tpu_custom_call.1} parent=1 // pred_check
      _
    $region11: #{tpu_custom_call.1} parent=1 // pred_check_branch
      %35 = sbr.rel (0) target = $region13
    $region12: #{tpu_custom_call.1} parent=1 // pred_region
      %36 = dma.done [#allocation3], 256
    $region13: #{tpu_custom_call.1} parent=1 // pred_fallthru
      _
    // Predicated region
    $region14: #{tpu_custom_call.1} parent=1 // pred_check
      _
    $region15: #{tpu_custom_call.1} parent=1 // pred_check_branch
      %38 = sbr.rel (0) target = $region17
    $region16: #{tpu_custom_call.1} parent=1 // pred_region
      %39 = dma.done [#allocation6], 512
    $region17: #{tpu_custom_call.1} parent=1 // pred_fallthru
      _
    %v40 = vld [vmem:[#allocation2] sm:$0xff]
    %v41 = vld [vmem:[#allocation2 + $0x8] sm:$0xff]
    %v42 = vld [vmem:[#allocation5] sm:$0xff]
    %v43 = vld [vmem:[#allocation5 + $0x8] sm:$0xff]
    %v44 = vld [vmem:[#allocation5 + $0x10] sm:$0xff]
    %v45 = vld [vmem:[#allocation5 + $0x18] sm:$0xff]
    %vm46 = vcmask 261120
    %v48 = vsel %vm46, %v40, 0
    %v51 = vsel %vm46, %v41, 0
    %53 = vmatprep.subr.mxu0 0.0
    %54 = vmatpush1.msra.mxu0 %v42
    %55 = vmatprep.subr.mxu0 0.0
    %56 = vmatpush1.msra.mxu0 %v43
    %57 = vmatprep.subr.mxu0 0.0
    %58 = vmatpush1.msra.mxu0 %v44
    %59 = vmatprep.subr.mxu0 0.0
    %60 = vmatpush1.msra.mxu0 %v45
    %61 = vmatprep.subr.mxu0 0.0
    %62 = vmatpush1.msra.mxu0 0.0
    %63 = vmatprep.subr.mxu0 0.0
    %64 = vmatpush1.msra.mxu0 0.0
    %65 = vmatprep.subr.mxu0 0.0
    %66 = vmatpush1.msra.mxu0 0.0
    %67 = vmatprep.subr.mxu0 0.0
    %68 = vmatpush1.msra.mxu0 0.0
    %69 = vmatprep.subr.mxu0 0.0
    %70 = vmatpush1.msra.mxu0 0.0
    %71 = vmatprep.subr.mxu0 0.0
    %72 = vmatpush1.msra.mxu0 0.0
    %73 = vmatprep.subr.mxu0 0.0
    %74 = vmatpush1.msra.mxu0 0.0
    %75 = vmatprep.subr.mxu0 0.0
    %76 = vmatpush1.msra.mxu0 0.0
    %77 = vmatprep.subr.mxu0 0.0
    %78 = vmatpush1.msra.mxu0 0.0
    %79 = vmatprep.subr.mxu0 0.0
    %80 = vmatpush1.msra.mxu0 0.0
    %81 = vmatprep.subr.mxu0 0.0
    %82 = vmatpush1.msra.mxu0 0.0
    %83 = vmatprep.subr.mxu0 0.0
    %84 = vmatpush1.msra.mxu0 0.0
    %85 = vmatprep.subr.mxu0 0.0
    %86 = vmatpush1.msra.mxu0 0.0
    %87 = vmatprep.subr.mxu0 0.0
    %88 = vmatpush1.msra.mxu0 0.0
    %89 = vmatprep.subr.mxu0 0.0
    %90 = vmatpush1.msra.mxu0 0.0
    %91 = vmatprep.subr.mxu0 0.0
    %92 = vmatpush1.msra.mxu0 0.0
    %93 = vmatprep.subr.mxu0 0.0
    %94 = vmatpush1.msra.mxu0 0.0
    %95 = vmatprep.subr.mxu0 0.0
    %96 = vmatpush1.msra.mxu0 0.0
    %97 = vmatprep.subr.mxu0 0.0
    %98 = vmatpush1.msra.mxu0 0.0
    %99 = vmatprep.subr.mxu0 0.0
    %100 = vmatpush1.msra.mxu0 0.0
    %101 = vmatprep.subr.mxu0 0.0
    %102 = vmatpush1.msra.mxu0 0.0
    %103 = vmatprep.subr.mxu0 0.0
    %104 = vmatpush1.msra.mxu0 0.0
    %105 = vmatprep.subr.mxu0 0.0
    %106 = vmatpush1.msra.mxu0 0.0
    %107 = vmatprep.subr.mxu0 0.0
    %108 = vmatpush1.msra.mxu0 0.0
    %109 = vmatprep.subr.mxu0 0.0
    %110 = vmatpush1.msra.mxu0 0.0
    %111 = vmatprep.subr.mxu0 0.0
    %112 = vmatpush1.msra.mxu0 0.0
    %113 = vmatprep.subr.mxu0 0.0
    %114 = vmatpush1.msra.mxu0 0.0
    %115 = vmatprep.subr.mxu0 0.0
    %116 = vmatpush1.msra.mxu0 0.0
    %117 = vmatprep.mubr.f32.mxu0 0.0
    %118 = vmatmul.mubr.f32.gmra.mrb[0].mxu0 %v48
    %v119 = vpop.f32.mrb[0].mxu0
    %v120 = vadd.f32 0.0, %v119
    %v121 = vpop.f32.mrb[0].mxu0
    %122 = vmatprep.mubr.f32.mxu0 0.0
    %123 = vmatmul.mubr.f32.gmra.mrb[0].mxu0 %v51
    %v124 = vpop.f32.mrb[0].mxu0
    %v125 = vadd.f32 0.0, %v124
    %v126 = vpop.f32.mrb[0].mxu0
    %127 = vdwg.mxu0
    %vm128 = vcmask 523264
    %129 = vst.msk [vmem:[#allocation7] sm:$0xff] %vm128, %v120
    %130 = vst.msk [vmem:[#allocation7 + $0x8] sm:$0xff] %vm128, %v125
    // Predicated region
    $region18: #{tpu_custom_call.1} parent=1 // pred_check
      _
    $region19: #{tpu_custom_call.1} parent=1 // pred_check_branch
      %132 = sbr.rel (0) target = $region21
    $region20: #{tpu_custom_call.1} parent=1 // pred_region
      %s134 = ssub.s32 256, 256
      %135 = vsyncadd [#allocation4], %s134
      %s136 = sshll.u32 [#allocation7], 4
      %s137 = int_to_ptr.vmem [resolvable:$true] %s136
      %142 = dma.vmem_to_hbm [thread:$0]  %s137, 256, %s2, [#allocation4], 128, 128, 8
    $region21: #{tpu_custom_call.1} parent=1 // pred_fallthru
      _
    // Predicated region
    $region22: #{tpu_custom_call.1} parent=1 // pred_check
      _
    $region23: #{tpu_custom_call.1} parent=1 // pred_check_branch
      %144 = sbr.rel (0) target = $region25
    $region24: #{tpu_custom_call.1} parent=1 // pred_region
      %145 = dma.done [#allocation4], 256
    $region25: #{tpu_custom_call.1} parent=1 // pred_fallthru
      _
    %146 = vsyncpa [#allocation3], 1
    %147 = vsyncpa [#allocation6], 1
    %148 = vsyncpa [#allocation4], 1

</llo_original>
